<compile_context>
chip_gen: v7x
topology: tpu7x:2x2x1
jax: 0.10.0
libtpu: 0.0.40
codegen_flags: <defaults>
</compile_context>

<pallas_src>
import functools

import jax
import jax.numpy as jnp
from jax.experimental import pallas as pl
from jax.experimental.pallas import tpu as pltpu


def _round_up(v, m):
    return (v + m - 1) // m * m


def _softq_kernel(x_ref, w1_ref, w2_ref, pb_ref, b4_ref, out_ref):
    """One batch tile: q = relu(relu(x@W1+b1)@W2+b2) . w4 + b4."""
    # pb_ref rows: 0 -> b1, 1 -> b2, 2 -> w4 (output weights as a row), 3..7 pad.

    # Layer 1 (MXU, bf16 inputs, f32 accumulation); bias/ReLU math in f32.
    h1 = jnp.dot(x_ref[...], w1_ref[...], preferred_element_type=jnp.float32)
    h1 = jnp.maximum(h1 + pb_ref[0:1, :], 0.0)

    # Layer 2.
    h2 = jnp.dot(h1.astype(w2_ref.dtype), w2_ref[...],
                 preferred_element_type=jnp.float32)
    h2 = jnp.maximum(h2 + pb_ref[1:2, :], 0.0)

    # Output layer (H -> 1): VPU multiply + XLU lane reduce; an N=1 MXU pass
    # would waste >99% of the systolic array and add an MXU round-trip.
    q = jnp.sum(h2 * pb_ref[2:3, :], axis=-1, keepdims=True) + b4_ref[0]
    out_ref[...] = q.astype(out_ref.dtype)


@functools.partial(jax.jit, static_argnames=("block_b", "compute_dtype"))
def soft_q_forward(state, action, params, *, block_b=512,
                   compute_dtype=jnp.bfloat16):
    """state: (B, S), action: (B, A) float32 -> q: (B, 1) float32."""
    w1, b1, w2, b2, w4, b4 = params
    B = state.shape[0]
    in_features = state.shape[1] + action.shape[1]
    hidden = w1.shape[1]

    # Concat once in the wrapper so layer 1 is one matmul; the streamed
    # activation (the only B-scaling HBM traffic) is cast to bf16.
    x = jnp.concatenate([state, action], axis=1).astype(compute_dtype)
    w1c = w1.astype(compute_dtype)
    w2c = w2.astype(compute_dtype)

    # Pack the tiny f32 params into one VMEM-resident (8, H) buffer.
    pb = jnp.zeros((8, hidden), jnp.float32)
    pb = pb.at[0].set(b1).at[1].set(b2).at[2].set(w4)
    b4s = jnp.reshape(b4, (1,)).astype(jnp.float32)

    # Batch tiling: rows per tile must be a multiple of 8; pad B up to a whole
    # number of tiles (padded rows are sliced off afterwards).
    block_b = max(8, _round_up(block_b, 8))
    tb = min(block_b, _round_up(B, 8))
    bp = _round_up(B, tb)
    if bp != B:
        x = jnp.pad(x, ((0, bp - B), (0, 0)))

    out = pl.pallas_call(
        _softq_kernel,
        out_shape=jax.ShapeDtypeStruct((bp, 1), jnp.float32),
        grid=(bp // tb,),
        in_specs=[
            pl.BlockSpec((tb, in_features), lambda i: (i, 0)),      # streamed x
            pl.BlockSpec((in_features, hidden), lambda i: (0, 0)),  # resident W1
            pl.BlockSpec((hidden, hidden), lambda i: (0, 0)),       # resident W2
            pl.BlockSpec((8, hidden), lambda i: (0, 0)),            # resident b1/b2/w4
            pl.BlockSpec(memory_space=pltpu.MemorySpace.SMEM),      # b4 scalar
        ],
        out_specs=pl.BlockSpec((tb, 1), lambda i: (i, 0)),
        compiler_params=pltpu.CompilerParams(
            dimension_semantics=("parallel",)),
    )(x, w1c, w2c, pb, b4s)
    return out[:B]


def init_params(key, state_size, action_size, hidden_size, init_w=0.003):
    """Mirrors the PyTorch module init; weights stored (in_features, out_features).

    linear1/linear2: torch default U(-1/sqrt(fan_in), 1/sqrt(fan_in)).
    linear4: U(-init_w, init_w) for weight and bias.
    """
    in1 = state_size + action_size
    k = jax.random.split(key, 6)

    bnd1 = 1.0 / float(in1) ** 0.5
    w1 = jax.random.uniform(k[0], (in1, hidden_size), jnp.float32, -bnd1, bnd1)
    b1 = jax.random.uniform(k[1], (hidden_size,), jnp.float32, -bnd1, bnd1)

    bnd2 = 1.0 / float(hidden_size) ** 0.5
    w2 = jax.random.uniform(k[2], (hidden_size, hidden_size), jnp.float32,
                            -bnd2, bnd2)
    b2 = jax.random.uniform(k[3], (hidden_size,), jnp.float32, -bnd2, bnd2)

    w4 = jax.random.uniform(k[4], (hidden_size,), jnp.float32, -init_w, init_w)
    b4 = jax.random.uniform(k[5], (1,), jnp.float32, -init_w, init_w)
    return (w1, b1, w2, b2, w4, b4)


def _reference(state, action, params, compute_dtype=jnp.bfloat16):
    """Pure-JAX reference mirroring the kernel's dtype handling."""
    w1, b1, w2, b2, w4, b4 = params
    up = lambda a: a.astype(compute_dtype).astype(jnp.float32)
    x = up(jnp.concatenate([state, action], axis=1))
    h1 = jnp.maximum(x @ up(w1) + b1, 0.0)
    h2 = jnp.maximum(up(h1) @ up(w2) + b2, 0.0)
    return jnp.sum(h2 * w4, axis=-1, keepdims=True) + b4


if __name__ == "__main__":
    state_size, action_size, hidden_size = 12, 4, 32
    batch = 8

    key = jax.random.PRNGKey(0)
    k_params, k_state, k_action = jax.random.split(key, 3)

    params = init_params(k_params, state_size, action_size, hidden_size)
    state = jax.random.normal(k_state, (batch, state_size), jnp.float32)
    action = jax.random.normal(k_action, (batch, action_size), jnp.float32)

    # Small-batch path (single tile, grid=(1,)).
    q = soft_q_forward(state, action, params)
    jax.block_until_ready(q)
    assert q.shape == (batch, 1)
    q_ref = _reference(state, action, params)
    assert jnp.allclose(q, q_ref, atol=2e-4, rtol=2e-3), (
        float(jnp.max(jnp.abs(q - q_ref))))

    # Multi-tile path: exercises the batch grid, padding and pipelining.
    batch2 = 200
    k_s2, k_a2 = jax.random.split(jax.random.PRNGKey(1), 2)
    state2 = jax.random.normal(k_s2, (batch2, state_size), jnp.float32)
    action2 = jax.random.normal(k_a2, (batch2, action_size), jnp.float32)
    q2 = soft_q_forward(state2, action2, params, block_b=64)
    jax.block_until_ready(q2)
    assert q2.shape == (batch2, 1)
    q2_ref = _reference(state2, action2, params)
    assert jnp.allclose(q2, q2_ref, atol=2e-4, rtol=2e-3), (
        float(jnp.max(jnp.abs(q2 - q2_ref))))

    print("KERNEL_OK")
</pallas_src>

<mosaic_0001>
module attributes {stable_mosaic.version = 11 : i64} {
  func.func @_softq_kernel(%arg0: i32, %arg1: memref<8x16xbf16, #tpu.memory_space<vmem>>, %arg2: memref<16x32xbf16, #tpu.memory_space<vmem>>, %arg3: memref<32x32xbf16, #tpu.memory_space<vmem>>, %arg4: memref<8x32xf32, #tpu.memory_space<vmem>>, %arg5: memref<1xf32, #tpu.memory_space<smem>>, %arg6: memref<8x1xf32, #tpu.memory_space<vmem>>) attributes {dimension_semantics = [#tpu.dimension_semantics<parallel>], iteration_bounds = array<i64: 1>, scalar_prefetch = 0 : i64, scratch_operands = 0 : i64, tpu.core_type = #tpu.core_type<tc>, window_params = [{transform_indices = @transform_0, window_bounds = array<i64: 8, 16>}, {pipeline_mode = #tpu.pipeline_mode<synchronous>, transform_indices = @transform_1, window_bounds = array<i64: 16, 32>}, {pipeline_mode = #tpu.pipeline_mode<synchronous>, transform_indices = @transform_2, window_bounds = array<i64: 32, 32>}, {pipeline_mode = #tpu.pipeline_mode<synchronous>, transform_indices = @transform_3, window_bounds = array<i64: 8, 32>}, {transform_indices = @transform_4, window_bounds = array<i64: 1>}, {transform_indices = @transform_5, window_bounds = array<i64: 8, 1>}]} {
    %c0 = arith.constant 0 : index
    %c0_0 = arith.constant 0 : index
    %0 = vector.load %arg1[%c0, %c0_0] : memref<8x16xbf16, #tpu.memory_space<vmem>>, vector<8x16xbf16>
    %c0_1 = arith.constant 0 : index
    %c0_2 = arith.constant 0 : index
    %1 = vector.load %arg2[%c0_1, %c0_2] : memref<16x32xbf16, #tpu.memory_space<vmem>>, vector<16x32xbf16>
    %cst = arith.constant dense<0.000000e+00> : vector<8x32xf32>
    %2 = tpu.matmul %0, %1, %cst {dimension_numbers = #tpu.dot_dimension_numbers<[1], [0], [0], [1], [0, 0, 1, 1], [], []>} : vector<8x16xbf16>, vector<16x32xbf16>, vector<8x32xf32> -> vector<8x32xf32>
    %c0_3 = arith.constant 0 : index
    %c0_4 = arith.constant 0 : index
    %3 = vector.load %arg4[%c0_3, %c0_4] : memref<8x32xf32, #tpu.memory_space<vmem>>, vector<1x32xf32>
    %4 = vector.broadcast %3 : vector<1x32xf32> to vector<8x32xf32>
    %5 = arith.addf %2, %4 : vector<8x32xf32>
    %cst_5 = arith.constant 0.000000e+00 : f32
    %6 = vector.broadcast %cst_5 : f32 to vector<8x32xf32>
    %7 = arith.maximumf %5, %6 : vector<8x32xf32>
    %8 = arith.truncf %7 : vector<8x32xf32> to vector<8x32xbf16>
    %c0_6 = arith.constant 0 : index
    %c0_7 = arith.constant 0 : index
    %9 = vector.load %arg3[%c0_6, %c0_7] : memref<32x32xbf16, #tpu.memory_space<vmem>>, vector<32x32xbf16>
    %cst_8 = arith.constant dense<0.000000e+00> : vector<8x32xf32>
    %10 = tpu.matmul %8, %9, %cst_8 {dimension_numbers = #tpu.dot_dimension_numbers<[1], [0], [0], [1], [0, 0, 1, 1], [], []>} : vector<8x32xbf16>, vector<32x32xbf16>, vector<8x32xf32> -> vector<8x32xf32>
    %c1 = arith.constant 1 : index
    %c0_9 = arith.constant 0 : index
    %11 = vector.load %arg4[%c1, %c0_9] : memref<8x32xf32, #tpu.memory_space<vmem>>, vector<1x32xf32>
    %12 = vector.broadcast %11 : vector<1x32xf32> to vector<8x32xf32>
    %13 = arith.addf %10, %12 : vector<8x32xf32>
    %cst_10 = arith.constant 0.000000e+00 : f32
    %14 = vector.broadcast %cst_10 : f32 to vector<8x32xf32>
    %15 = arith.maximumf %13, %14 : vector<8x32xf32>
    %c2 = arith.constant 2 : index
    %c0_11 = arith.constant 0 : index
    %16 = vector.load %arg4[%c2, %c0_11] : memref<8x32xf32, #tpu.memory_space<vmem>>, vector<1x32xf32>
    %17 = vector.broadcast %16 : vector<1x32xf32> to vector<8x32xf32>
    %18 = arith.mulf %15, %17 : vector<8x32xf32>
    %cst_12 = arith.constant dense<0.000000e+00> : vector<8xf32>
    %19 = vector.multi_reduction <add>, %18, %cst_12 [1] : vector<8x32xf32> to vector<8xf32>
    %20 = vector.shape_cast %19 : vector<8xf32> to vector<8x1xf32>
    %c0_13 = arith.constant 0 : index
    %21 = memref.load %arg5[%c0_13] : memref<1xf32, #tpu.memory_space<smem>>
    %22 = vector.broadcast %21 : f32 to vector<8x1xf32>
    %23 = arith.addf %20, %22 : vector<8x1xf32>
    %c0_14 = arith.constant 0 : index
    %c0_15 = arith.constant 0 : index
    %24 = vector.load %arg6[%c0_14, %c0_15] : memref<8x1xf32, #tpu.memory_space<vmem>>, vector<8x1xf32>
    tpu.vector_store %arg6[%c0_14, %c0_15], %23 {strides = array<i32>} : memref<8x1xf32, #tpu.memory_space<vmem>>, vector<8x1xf32>,
    return
  }
  func.func @transform_0(%arg0: i32) -> (i32, i32) {
    %c0_i32 = arith.constant 0 : i32
    %c0_i32_0 = arith.constant 0 : i32
    return %arg0, %c0_i32 : i32, i32
  }
  func.func @transform_1(%arg0: i32) -> (i32, i32) {
    %c0_i32 = arith.constant 0 : i32
    %c0_i32_0 = arith.constant 0 : i32
    %c0_i32_1 = arith.constant 0 : i32
    return %c0_i32, %c0_i32_0 : i32, i32
  }
  func.func @transform_2(%arg0: i32) -> (i32, i32) {
    %c0_i32 = arith.constant 0 : i32
    %c0_i32_0 = arith.constant 0 : i32
    %c0_i32_1 = arith.constant 0 : i32
    return %c0_i32, %c0_i32_0 : i32, i32
  }
  func.func @transform_3(%arg0: i32) -> (i32, i32) {
    %c0_i32 = arith.constant 0 : i32
    %c0_i32_0 = arith.constant 0 : i32
    %c0_i32_1 = arith.constant 0 : i32
    return %c0_i32, %c0_i32_0 : i32, i32
  }
  func.func @transform_4(%arg0: i32) -> i32 {
    %c0_i32 = arith.constant 0 : i32
    %c0_i32_0 = arith.constant 0 : i32
    return %c0_i32 : i32
  }
  func.func @transform_5(%arg0: i32) -> (i32, i32) {
    %c0_i32 = arith.constant 0 : i32
    %c0_i32_0 = arith.constant 0 : i32
    return %arg0, %c0_i32 : i32, i32
  }
}

</mosaic_0001>

<llo_original>
// kernel: soft_q_forward.1
$region0: #{soft_q_forward.1}
  #allocation0 [shape = 'u32[]', space=smem, size = 0x4, offset = 0x4, fixed_abs, tag = 'smem constant byte address 0x4 - core index']
  #allocation1 [shape = 'u32[144,128]{1,0:T(1,128)}', space=vmem, size = 0x12000, scoped, tag = 'internal scratch']
  #allocation2 [shape = 'f32[1]{0:T(128)S(6)}', space=smem, size = 0x200, scoped, tag = 'scoped memory for soft_q_forward.1']
  %s0 = inlined_call_operand.vmem [shape: bf16[8,16], index: 0, kind: input, shape index: {}]
  %s1 = inlined_call_operand.vmem [shape: bf16[16,32], index: 1, kind: input, shape index: {}]
  %s2 = inlined_call_operand.vmem [shape: bf16[32,32], index: 2, kind: input, shape index: {}]
  %s3 = inlined_call_operand.vmem [shape: f32[8,32], index: 3, kind: input, shape index: {}]
  %s4 = inlined_call_operand.<no memory space> [shape: f32[1], index: 4, kind: input, shape index: {}]
  %s5 = inlined_call_operand.vmem [shape: f32[8,1], index: 5, kind: output, shape index: {}]
  %s6 = sld [smem:[#allocation0]]
  $region30: #{soft_q_forward.1} parent=0
    _
  %s8 = ssub.s32 1, %s6
  %s9 = scalar_select 0, %s8, %s6
  %10 = sst [smem:[#allocation2]] %s4
  // Predicated region
  $region2: #{soft_q_forward.1} parent=0 // pred_check
    _
  $region3: #{soft_q_forward.1} parent=0 // pred_check_branch
    %12 = sbr.rel (0) target = $region5
  $region4: #{soft_q_forward.1} parent=0 // pred_region
    _
  $region5: #{soft_q_forward.1} parent=0 // pred_fallthru
    _
  // Predicated region
  $region6: #{soft_q_forward.1} parent=0 // pred_check
    _
  $region7: #{soft_q_forward.1} parent=0 // pred_check_branch
    %14 = sbr.rel (0) target = $region9
  $region8: #{soft_q_forward.1} parent=0 // pred_region
    _
  $region9: #{soft_q_forward.1} parent=0 // pred_fallthru
    _
  // Predicated region
  $region10: #{soft_q_forward.1} parent=0 // pred_check
    _
  $region11: #{soft_q_forward.1} parent=0 // pred_check_branch
    %16 = sbr.rel (0) target = $region13
  $region12: #{soft_q_forward.1} parent=0 // pred_region
    _
  $region13: #{soft_q_forward.1} parent=0 // pred_fallthru
    _
  // Predicated region
  $region14: #{soft_q_forward.1} parent=0 // pred_check
    _
  $region15: #{soft_q_forward.1} parent=0 // pred_check_branch
    %18 = sbr.rel (0) target = $region17
  $region16: #{soft_q_forward.1} parent=0 // pred_region
    _
  $region17: #{soft_q_forward.1} parent=0 // pred_fallthru
    _
  // Predicated region
  $region18: #{soft_q_forward.1} parent=0 // pred_check
    _
  $region19: #{soft_q_forward.1} parent=0 // pred_check_branch
    %20 = sbr.rel (0) target = $region21
  $region20: #{soft_q_forward.1} parent=0 // pred_region
    _
  $region21: #{soft_q_forward.1} parent=0 // pred_fallthru
    _
  %v22 = vld [vmem:[%s0] sm:$0xf]
  %v23 = vld [vmem:[%s1] sm:$0xf]
  %v24 = vld [vmem:[%s1 + $0x4] sm:$0xf]
  %v25 = vld [vmem:[%s3] sm:$0x1]
  %v26 = vlaneseq
  %v27 = vshrl.u32 %v26, 7
  %v28 = vsub.s32 0, %v27
  %v29 = vrot.slane %v25, %v28
  %v32 = vunpack.c.l.b16 %v23
  %v33 = vunpack.c.l.b16 %v24
  %v34 = vpack.c.b16 %v33, %v32
  %vm36 = vcmask 130048
  %v38 = vsel %vm36, %v22, 0
  %40 = vmatprep.subr.bf16.mxu0 0
  %41 = vmatpush1.bf16.msra.mxu0 %v34
  %42 = vmatprep.subr.bf16.mxu0 0
  %43 = vmatpush1.bf16.msra.mxu0 0
  %44 = vmatprep.subr.bf16.mxu0 0
  %45 = vmatpush1.bf16.msra.mxu0 0
  %46 = vmatprep.subr.bf16.mxu0 0
  %47 = vmatpush1.bf16.msra.mxu0 0
  %48 = vmatprep.subr.bf16.mxu0 0
  %49 = vmatpush1.bf16.msra.mxu0 0
  %50 = vmatprep.subr.bf16.mxu0 0
  %51 = vmatpush1.bf16.msra.mxu0 0
  %52 = vmatprep.subr.bf16.mxu0 0
  %53 = vmatpush1.bf16.msra.mxu0 0
  %54 = vmatprep.subr.bf16.mxu0 0
  %55 = vmatpush1.bf16.msra.mxu0 0
  %56 = vmatprep.subr.bf16.mxu0 0
  %57 = vmatpush1.bf16.msra.mxu0 0
  %58 = vmatprep.subr.bf16.mxu0 0
  %59 = vmatpush1.bf16.msra.mxu0 0
  %60 = vmatprep.subr.bf16.mxu0 0
  %61 = vmatpush1.bf16.msra.mxu0 0
  %62 = vmatprep.subr.bf16.mxu0 0
  %63 = vmatpush1.bf16.msra.mxu0 0
  %64 = vmatprep.subr.bf16.mxu0 0
  %65 = vmatpush1.bf16.msra.mxu0 0
  %66 = vmatprep.subr.bf16.mxu0 0
  %67 = vmatpush1.bf16.msra.mxu0 0
  %68 = vmatprep.subr.bf16.mxu0 0
  %69 = vmatpush1.bf16.msra.mxu0 0
  %70 = vmatprep.subr.bf16.mxu0 0
  %71 = vmatpush1.bf16.msra.mxu0 0
  %72 = vmatprep.mubr.bf16.mxu0 0
  %73 = vmatmul.mubr.bf16.gmra.mrb[0].mxu0 %v38
  %v74 = vpop.f32.mrb[0].mxu0
  %v75 = vadd.f32 %v29, %v74
  %v76 = vpop.f32.mrb[0].mxu0
  %v77 = vpop.f32.mrb[0].mxu0
  %v78 = vpop.f32.mrb[0].mxu0
  %79 = vdwg.mxu0
  %v80 = vmax.f32 %v75, 0.0
  %v81 = vpack.c.bf16 %v80, %v80
  %v82 = vld [vmem:[%s2] sm:$0xf]
  %v83 = vld [vmem:[%s2 + $0x4] sm:$0xf]
  %v84 = vld [vmem:[%s2 + $0x8] sm:$0xf]
  %v85 = vld [vmem:[%s2 + $0xc] sm:$0xf]
  %v86 = vld [vmem:[%s3 + $0x1] sm:$0x1]
  %v87 = vlaneseq
  %v88 = vshrl.u32 %v87, 7
  %v89 = vsub.s32 0, %v88
  %v90 = vrot.slane %v86, %v89
  %v95 = vunpack.c.l.b16 %v82
  %v96 = vunpack.c.l.b16 %v83
  %v97 = vunpack.c.l.b16 %v84
  %v98 = vunpack.c.l.b16 %v85
  %v99 = vpack.c.b16 %v96, %v95
  %v100 = vpack.c.b16 %v98, %v97
  %vm103 = vcmask 261120
  %v105 = vsel %vm103, %v81, 0
  %107 = vmatprep.subr.bf16.mxu0 0
  %108 = vmatpush1.bf16.msra.mxu0 %v99
  %109 = vmatprep.subr.bf16.mxu0 0
  %110 = vmatpush1.bf16.msra.mxu0 %v100
  %111 = vmatprep.subr.bf16.mxu0 0
  %112 = vmatpush1.bf16.msra.mxu0 0
  %113 = vmatprep.subr.bf16.mxu0 0
  %114 = vmatpush1.bf16.msra.mxu0 0
  %115 = vmatprep.subr.bf16.mxu0 0
  %116 = vmatpush1.bf16.msra.mxu0 0
  %117 = vmatprep.subr.bf16.mxu0 0
  %118 = vmatpush1.bf16.msra.mxu0 0
  %119 = vmatprep.subr.bf16.mxu0 0
  %120 = vmatpush1.bf16.msra.mxu0 0
  %121 = vmatprep.subr.bf16.mxu0 0
  %122 = vmatpush1.bf16.msra.mxu0 0
  %123 = vmatprep.subr.bf16.mxu0 0
  %124 = vmatpush1.bf16.msra.mxu0 0
  %125 = vmatprep.subr.bf16.mxu0 0
  %126 = vmatpush1.bf16.msra.mxu0 0
  %127 = vmatprep.subr.bf16.mxu0 0
  %128 = vmatpush1.bf16.msra.mxu0 0
  %129 = vmatprep.subr.bf16.mxu0 0
  %130 = vmatpush1.bf16.msra.mxu0 0
  %131 = vmatprep.subr.bf16.mxu0 0
  %132 = vmatpush1.bf16.msra.mxu0 0
  %133 = vmatprep.subr.bf16.mxu0 0
  %134 = vmatpush1.bf16.msra.mxu0 0
  %135 = vmatprep.subr.bf16.mxu0 0
  %136 = vmatpush1.bf16.msra.mxu0 0
  %137 = vmatprep.subr.bf16.mxu0 0
  %138 = vmatpush1.bf16.msra.mxu0 0
  %139 = vmatprep.mubr.bf16.mxu0 0
  %140 = vmatmul.mubr.bf16.gmra.mrb[0].mxu0 %v105
  %v141 = vpop.f32.mrb[0].mxu0
  %v142 = vadd.f32 %v90, %v141
  %v143 = vpop.f32.mrb[0].mxu0
  %v144 = vpop.f32.mrb[0].mxu0
  %v145 = vpop.f32.mrb[0].mxu0
  %146 = vdwg.mxu0
  %v147 = vmax.f32 %v142, 0.0
  %v148 = vld [vmem:[%s3 + $0x2] sm:$0x1]
  %v149 = vlaneseq
  %v150 = vshrl.u32 %v149, 7
  %v151 = vsub.s32 0, %v150
  %v152 = vrot.slane %v148, %v151
  %v153 = vmul.f32 %v147, %v152
  %v154 = vsel %vm103, %v153, 0.0
  %155 = vadd.xlane.f32.xlu0 %v154
  %v156 = vpop.xlane.xlu0 %155
  %s157 = sld [smem:[#allocation2]]
  %v158 = vstv %s157
  %v159 = vadd.f32 %v156, %v158
  %vm160 = vcmask 7168
  %161 = vst.msk [vmem:[%s5] sm:$0xff] %vm160, %v159
  // Predicated region
  $region22: #{soft_q_forward.1} parent=0 // pred_check
    _
  $region23: #{soft_q_forward.1} parent=0 // pred_check_branch
    %163 = sbr.rel (0) target = $region25
  $region24: #{soft_q_forward.1} parent=0 // pred_region
    _
  $region25: #{soft_q_forward.1} parent=0 // pred_fallthru
    _
  // Predicated region
  $region26: #{soft_q_forward.1} parent=0 // pred_check
    _
  $region27: #{soft_q_forward.1} parent=0 // pred_check_branch
    %165 = sbr.rel (0) target = $region29
  $region28: #{soft_q_forward.1} parent=0 // pred_region
    _
  $region29: #{soft_q_forward.1} parent=0 // pred_fallthru
    _

</llo_original>
